<compile_context>
chip_gen: v6e
topology: v6e:2x2x1
jax: 0.10.0
libtpu: 0.0.40
codegen_flags: <defaults>
</compile_context>

<pallas_src>
import jax
import jax.numpy as jnp
from jax.experimental import pallas as pl
from jax.experimental.pallas import tpu as pltpu


def _round_up(x, m):
    return (x + m - 1) // m * m


# ----------------------------------------------------------------------------
# Kernel: one TB-row batch tile per grid step; all weights resident in VMEM.
# ----------------------------------------------------------------------------
def _mlp_penn_kernel(fp_ref, pdi_ref, w1f_ref, w1p_ref, b1_ref,
                     w2_ref, b2_ref, w3_ref, b3_ref, o_ref):
    n_out = o_ref.shape[-1]

    # Layer 1 with the concat fused in:
    #   [fp, pdi] @ W1 = fp @ W1[:n_fp] + pdi * W1[n_fp]
    fp = fp_ref[...].astype(jnp.bfloat16)        # in-kernel cast (hidden under matmul)
    h1 = jnp.dot(fp, w1f_ref[...], preferred_element_type=jnp.float32)
    h1 = h1 + pdi_ref[...] * w1p_ref[...].astype(jnp.float32)
    h1 = h1 + b1_ref[...]
    h1 = jnp.maximum(h1, 0.0)                    # ReLU (dropout1 = identity, eval)

    # Layer 2
    h2 = jnp.dot(h1.astype(jnp.bfloat16), w2_ref[...],
                 preferred_element_type=jnp.float32) + b2_ref[...]
    h2 = jnp.maximum(h2, 0.0)                    # ReLU (dropout2 = identity, eval)

    # Output layer: compute on the 128 padded lanes, store only the real n_out
    # columns.  NOTE: rows beyond B in a partial final batch tile are masked
    # by Pallas on writeback — keep this store going through the BlockSpec
    # path so that invariant holds.
    out = jnp.dot(h2.astype(jnp.bfloat16), w3_ref[...],
                  preferred_element_type=jnp.float32) + b3_ref[...]
    o_ref[...] = out[:, :n_out].astype(o_ref.dtype)


# ----------------------------------------------------------------------------
# Parameter preparation: split W1 into fp/PDI parts, zero-pad hidden dims to
# lane-aligned widths, cast weights to bf16 (biases stay f32).  ReLU(0)=0
# keeps padded lanes identically zero, so the math is unchanged.
# ----------------------------------------------------------------------------
def prepare_params(params, n_fp, compute_dtype=jnp.bfloat16):
    w1, b1, w2, b2, w3, b3 = params           # w: (in, out), b: (1, out), f32
    l1, l2, n_out = w1.shape[1], w2.shape[1], w3.shape[1]
    L1, L2, N_OUT = _round_up(l1, 128), _round_up(l2, 128), _round_up(n_out, 128)

    def pad2(a, rows, cols):
        return jnp.pad(a, ((0, rows - a.shape[0]), (0, cols - a.shape[1])))

    w1_fp = pad2(w1[:n_fp], n_fp, L1).astype(compute_dtype)   # (n_fp, L1)
    w1_pdi = pad2(w1[n_fp:], 1, L1).astype(compute_dtype)     # (1,   L1)
    b1p = pad2(b1, 1, L1)                                     # f32
    w2p = pad2(w2, L1, L2).astype(compute_dtype)              # (L1, L2)
    b2p = pad2(b2, 1, L2)
    w3p = pad2(w3, L2, N_OUT).astype(compute_dtype)           # (L2, N_OUT)
    b3p = pad2(b3, 1, N_OUT)
    return (w1_fp, w1_pdi, b1p, w2p, b2p, w3p, b3p), n_out


# ----------------------------------------------------------------------------
# Forward wrapper
# ----------------------------------------------------------------------------
def mlp_penn_forward(fp, pdi, prepared, n_out, tb=2048):
    """fp: (B, n_fp) f32, pdi: (B, 1) f32.  Returns (B, n_out) float32."""
    w1_fp, w1_pdi, b1, w2, b2, w3, b3 = prepared
    B, n_fp = fp.shape
    L1, L2, N = w1_fp.shape[1], w2.shape[1], w3.shape[1]

    fp = fp.astype(jnp.float32)
    pdi = pdi.reshape(B, 1).astype(jnp.float32)

    # Batch tile: multiple of 8, default 2048, and clamped so the grid has at
    # least 2 steps whenever B > 8 (v7x dual-TensorCore sharding via
    # dimension_semantics=("parallel",); harmless on v5e/v6e).
    TB = max(8, min(tb, _round_up(pl.cdiv(B, 2), 8)))
    grid = (pl.cdiv(B, TB),)

    full = lambda a: pl.BlockSpec(a.shape, lambda i: (0,) * a.ndim)

    flops = 2 * B * ((n_fp + 1) * L1 + L1 * L2 + L2 * N)
    bytes_accessed = (
        fp.size * 4 + pdi.size * 4 + B * n_out * 4
        + sum(a.size * a.dtype.itemsize for a in prepared))

    out = pl.pallas_call(
        _mlp_penn_kernel,
        out_shape=jax.ShapeDtypeStruct((B, n_out), jnp.float32),
        grid=grid,
        in_specs=[
            pl.BlockSpec((TB, n_fp), lambda i: (i, 0)),   # fp tile (f32)
            pl.BlockSpec((TB, 1), lambda i: (i, 0)),      # PDI tile (f32)
            full(w1_fp), full(w1_pdi), full(b1),          # resident weights
            full(w2), full(b2), full(w3), full(b3),
        ],
        out_specs=pl.BlockSpec((TB, n_out), lambda i: (i, 0)),
        compiler_params=pltpu.CompilerParams(
            dimension_semantics=("parallel",)),
        cost_estimate=pl.CostEstimate(
            flops=flops, transcendentals=0, bytes_accessed=bytes_accessed),
    )(fp, pdi, w1_fp, w1_pdi, b1, w2, b2, w3, b3)

    return out


# ----------------------------------------------------------------------------
# Parameter init matching nn.Linear shapes (stored transposed: (in, out)).
# ----------------------------------------------------------------------------
def init_params(key, n_fp, l1=120, l2=120, latent_param_size=11):
    ks = jax.random.split(key, 6)

    def linear(kw, kb, fan_in, fan_out):
        bound = 1.0 / jnp.sqrt(fan_in)
        w = jax.random.uniform(kw, (fan_in, fan_out), jnp.float32, -bound, bound)
        b = jax.random.uniform(kb, (1, fan_out), jnp.float32, -bound, bound)
        return w, b

    w1, b1 = linear(ks[0], ks[1], n_fp + 1, l1)
    w2, b2 = linear(ks[2], ks[3], l1, l2)
    w3, b3 = linear(ks[4], ks[5], l2, latent_param_size)
    return (w1, b1, w2, b2, w3, b3)


# ----------------------------------------------------------------------------
# Reference (same bf16-rounded operands, f32 accumulation) for verification.
# ----------------------------------------------------------------------------
def _reference(fp, pdi, params, n_fp):
    w1, b1, w2, b2, w3, b3 = params
    rd = lambda a: a.astype(jnp.bfloat16).astype(jnp.float32)
    h1 = rd(fp) @ rd(w1[:n_fp]) + pdi.reshape(-1, 1) * rd(w1[n_fp:]) + b1
    h1 = jnp.maximum(h1, 0.0)
    h2 = rd(h1) @ rd(w2) + b2
    h2 = jnp.maximum(h2, 0.0)
    return rd(h2) @ rd(w3) + b3


if __name__ == "__main__":
    key = jax.random.PRNGKey(0)
    k_fp, k_pdi, k_params = jax.random.split(key, 3)

    B, n_fp = 8, 32
    fp = jax.random.normal(k_fp, (B, n_fp), jnp.float32)
    pdi = jax.random.normal(k_pdi, (B, 1), jnp.float32)

    raw_params = init_params(k_params, n_fp)
    prepared, n_out = prepare_params(raw_params, n_fp)

    out = mlp_penn_forward(fp, pdi, prepared, n_out)
    jax.block_until_ready(out)

    ref = _reference(fp, pdi, raw_params, n_fp)
    assert out.shape == (B, 11)
    assert jnp.allclose(out, ref, atol=1e-3, rtol=1e-3)

    print("KERNEL_OK")
</pallas_src>

<mosaic_0001>
module attributes {stable_mosaic.version = 11 : i64} {
  func.func @_mlp_penn_kernel(%arg0: i32, %arg1: memref<8x32xf32, #tpu.memory_space<vmem>>, %arg2: memref<8x1xf32, #tpu.memory_space<vmem>>, %arg3: memref<32x128xbf16, #tpu.memory_space<vmem>>, %arg4: memref<1x128xbf16, #tpu.memory_space<vmem>>, %arg5: memref<1x128xf32, #tpu.memory_space<vmem>>, %arg6: memref<128x128xbf16, #tpu.memory_space<vmem>>, %arg7: memref<1x128xf32, #tpu.memory_space<vmem>>, %arg8: memref<128x128xbf16, #tpu.memory_space<vmem>>, %arg9: memref<1x128xf32, #tpu.memory_space<vmem>>, %arg10: memref<8x11xf32, #tpu.memory_space<vmem>>) attributes {dimension_semantics = [#tpu.dimension_semantics<parallel>], iteration_bounds = array<i64: 1>, scalar_prefetch = 0 : i64, scratch_operands = 0 : i64, tpu.core_type = #tpu.core_type<tc>, window_params = [{transform_indices = @transform_0, window_bounds = array<i64: 8, 32>}, {transform_indices = @transform_1, window_bounds = array<i64: 8, 1>}, {pipeline_mode = #tpu.pipeline_mode<synchronous>, transform_indices = @transform_2, window_bounds = array<i64: 32, 128>}, {pipeline_mode = #tpu.pipeline_mode<synchronous>, transform_indices = @transform_3, window_bounds = array<i64: 1, 128>}, {pipeline_mode = #tpu.pipeline_mode<synchronous>, transform_indices = @transform_4, window_bounds = array<i64: 1, 128>}, {pipeline_mode = #tpu.pipeline_mode<synchronous>, transform_indices = @transform_5, window_bounds = array<i64: 128, 128>}, {pipeline_mode = #tpu.pipeline_mode<synchronous>, transform_indices = @transform_6, window_bounds = array<i64: 1, 128>}, {pipeline_mode = #tpu.pipeline_mode<synchronous>, transform_indices = @transform_7, window_bounds = array<i64: 128, 128>}, {pipeline_mode = #tpu.pipeline_mode<synchronous>, transform_indices = @transform_8, window_bounds = array<i64: 1, 128>}, {transform_indices = @transform_9, window_bounds = array<i64: 8, 11>}]} {
    %c0 = arith.constant 0 : index
    %c0_0 = arith.constant 0 : index
    %0 = vector.load %arg1[%c0, %c0_0] : memref<8x32xf32, #tpu.memory_space<vmem>>, vector<8x32xf32>
    %1 = arith.truncf %0 : vector<8x32xf32> to vector<8x32xbf16>
    %c0_1 = arith.constant 0 : index
    %c0_2 = arith.constant 0 : index
    %2 = vector.load %arg3[%c0_1, %c0_2] : memref<32x128xbf16, #tpu.memory_space<vmem>>, vector<32x128xbf16>
    %cst = arith.constant dense<0.000000e+00> : vector<8x128xf32>
    %3 = tpu.matmul %1, %2, %cst {dimension_numbers = #tpu.dot_dimension_numbers<[1], [0], [0], [1], [0, 0, 1, 1], [], []>} : vector<8x32xbf16>, vector<32x128xbf16>, vector<8x128xf32> -> vector<8x128xf32>
    %c0_3 = arith.constant 0 : index
    %c0_4 = arith.constant 0 : index
    %4 = vector.load %arg2[%c0_3, %c0_4] : memref<8x1xf32, #tpu.memory_space<vmem>>, vector<8x1xf32>
    %c0_5 = arith.constant 0 : index
    %c0_6 = arith.constant 0 : index
    %5 = vector.load %arg4[%c0_5, %c0_6] : memref<1x128xbf16, #tpu.memory_space<vmem>>, vector<1x128xbf16>
    %6 = arith.extf %5 : vector<1x128xbf16> to vector<1x128xf32>
    %7 = vector.broadcast %4 : vector<8x1xf32> to vector<8x128xf32>
    %8 = vector.broadcast %6 : vector<1x128xf32> to vector<8x128xf32>
    %9 = arith.mulf %7, %8 : vector<8x128xf32>
    %10 = arith.addf %3, %9 : vector<8x128xf32>
    %c0_7 = arith.constant 0 : index
    %c0_8 = arith.constant 0 : index
    %11 = vector.load %arg5[%c0_7, %c0_8] : memref<1x128xf32, #tpu.memory_space<vmem>>, vector<1x128xf32>
    %12 = vector.broadcast %11 : vector<1x128xf32> to vector<8x128xf32>
    %13 = arith.addf %10, %12 : vector<8x128xf32>
    %cst_9 = arith.constant 0.000000e+00 : f32
    %14 = vector.broadcast %cst_9 : f32 to vector<8x128xf32>
    %15 = arith.maximumf %13, %14 : vector<8x128xf32>
    %16 = arith.truncf %15 : vector<8x128xf32> to vector<8x128xbf16>
    %c0_10 = arith.constant 0 : index
    %c0_11 = arith.constant 0 : index
    %17 = vector.load %arg6[%c0_10, %c0_11] : memref<128x128xbf16, #tpu.memory_space<vmem>>, vector<128x128xbf16>
    %cst_12 = arith.constant dense<0.000000e+00> : vector<8x128xf32>
    %18 = tpu.matmul %16, %17, %cst_12 {dimension_numbers = #tpu.dot_dimension_numbers<[1], [0], [0], [1], [0, 0, 1, 1], [], []>} : vector<8x128xbf16>, vector<128x128xbf16>, vector<8x128xf32> -> vector<8x128xf32>
    %c0_13 = arith.constant 0 : index
    %c0_14 = arith.constant 0 : index
    %19 = vector.load %arg7[%c0_13, %c0_14] : memref<1x128xf32, #tpu.memory_space<vmem>>, vector<1x128xf32>
    %20 = vector.broadcast %19 : vector<1x128xf32> to vector<8x128xf32>
    %21 = arith.addf %18, %20 : vector<8x128xf32>
    %cst_15 = arith.constant 0.000000e+00 : f32
    %22 = vector.broadcast %cst_15 : f32 to vector<8x128xf32>
    %23 = arith.maximumf %21, %22 : vector<8x128xf32>
    %24 = arith.truncf %23 : vector<8x128xf32> to vector<8x128xbf16>
    %c0_16 = arith.constant 0 : index
    %c0_17 = arith.constant 0 : index
    %25 = vector.load %arg8[%c0_16, %c0_17] : memref<128x128xbf16, #tpu.memory_space<vmem>>, vector<128x128xbf16>
    %cst_18 = arith.constant dense<0.000000e+00> : vector<8x128xf32>
    %26 = tpu.matmul %24, %25, %cst_18 {dimension_numbers = #tpu.dot_dimension_numbers<[1], [0], [0], [1], [0, 0, 1, 1], [], []>} : vector<8x128xbf16>, vector<128x128xbf16>, vector<8x128xf32> -> vector<8x128xf32>
    %c0_19 = arith.constant 0 : index
    %c0_20 = arith.constant 0 : index
    %27 = vector.load %arg9[%c0_19, %c0_20] : memref<1x128xf32, #tpu.memory_space<vmem>>, vector<1x128xf32>
    %28 = vector.broadcast %27 : vector<1x128xf32> to vector<8x128xf32>
    %29 = arith.addf %26, %28 : vector<8x128xf32>
    %30 = vector.extract_strided_slice %29 {offsets = [0, 0], sizes = [8, 11], strides = [1, 1]} : vector<8x128xf32> to vector<8x11xf32>
    %c0_21 = arith.constant 0 : index
    %c0_22 = arith.constant 0 : index
    %31 = vector.load %arg10[%c0_21, %c0_22] : memref<8x11xf32, #tpu.memory_space<vmem>>, vector<8x11xf32>
    tpu.vector_store %arg10[%c0_21, %c0_22], %30 {strides = array<i32>} : memref<8x11xf32, #tpu.memory_space<vmem>>, vector<8x11xf32>,
    return
  }
  func.func @transform_0(%arg0: i32) -> (i32, i32) {
    %c0_i32 = arith.constant 0 : i32
    %c0_i32_0 = arith.constant 0 : i32
    return %arg0, %c0_i32 : i32, i32
  }
  func.func @transform_1(%arg0: i32) -> (i32, i32) {
    %c0_i32 = arith.constant 0 : i32
    %c0_i32_0 = arith.constant 0 : i32
    return %arg0, %c0_i32 : i32, i32
  }
  func.func @transform_2(%arg0: i32) -> (i32, i32) {
    %c0_i32 = arith.constant 0 : i32
    %c0_i32_0 = arith.constant 0 : i32
    %c0_i32_1 = arith.constant 0 : i32
    return %c0_i32, %c0_i32_0 : i32, i32
  }
  func.func @transform_3(%arg0: i32) -> (i32, i32) {
    %c0_i32 = arith.constant 0 : i32
    %c0_i32_0 = arith.constant 0 : i32
    %c0_i32_1 = arith.constant 0 : i32
    return %c0_i32, %c0_i32_0 : i32, i32
  }
  func.func @transform_4(%arg0: i32) -> (i32, i32) {
    %c0_i32 = arith.constant 0 : i32
    %c0_i32_0 = arith.constant 0 : i32
    %c0_i32_1 = arith.constant 0 : i32
    return %c0_i32, %c0_i32_0 : i32, i32
  }
  func.func @transform_5(%arg0: i32) -> (i32, i32) {
    %c0_i32 = arith.constant 0 : i32
    %c0_i32_0 = arith.constant 0 : i32
    %c0_i32_1 = arith.constant 0 : i32
    return %c0_i32, %c0_i32_0 : i32, i32
  }
  func.func @transform_6(%arg0: i32) -> (i32, i32) {
    %c0_i32 = arith.constant 0 : i32
    %c0_i32_0 = arith.constant 0 : i32
    %c0_i32_1 = arith.constant 0 : i32
    return %c0_i32, %c0_i32_0 : i32, i32
  }
  func.func @transform_7(%arg0: i32) -> (i32, i32) {
    %c0_i32 = arith.constant 0 : i32
    %c0_i32_0 = arith.constant 0 : i32
    %c0_i32_1 = arith.constant 0 : i32
    return %c0_i32, %c0_i32_0 : i32, i32
  }
  func.func @transform_8(%arg0: i32) -> (i32, i32) {
    %c0_i32 = arith.constant 0 : i32
    %c0_i32_0 = arith.constant 0 : i32
    %c0_i32_1 = arith.constant 0 : i32
    return %c0_i32, %c0_i32_0 : i32, i32
  }
  func.func @transform_9(%arg0: i32) -> (i32, i32) {
    %c0_i32 = arith.constant 0 : i32
    %c0_i32_0 = arith.constant 0 : i32
    return %arg0, %c0_i32 : i32, i32
  }
}

</mosaic_0001>

<llo_original>
// kernel: tpu_custom_call.1
$region0: #{tpu_custom_call.1}
  #allocation0 [shape = 'u32[]', space=smem, size = 0x4, offset = 0x4, fixed_abs, tag = 'smem constant byte address 0x4 - core index']
  #allocation1 [shape = 'u32[144,128]{1,0:T(1,128)}', space=vmem, size = 0x12000, scoped, tag = 'internal scratch']
  %s0 = inlined_call_operand.vmem [shape: f32[8,32], index: 0, kind: input, shape index: {}]
  %s1 = inlined_call_operand.vmem [shape: f32[8,1], index: 1, kind: input, shape index: {}]
  %s2 = inlined_call_operand.hbm [shape: bf16[32,128], index: 2, kind: input, shape index: {}]
  %s3 = inlined_call_operand.vmem [shape: bf16[1,128], index: 3, kind: input, shape index: {}]
  %s4 = inlined_call_operand.vmem [shape: f32[1,128], index: 4, kind: input, shape index: {}]
  %s5 = inlined_call_operand.hbm [shape: bf16[128,128], index: 5, kind: input, shape index: {}]
  %s6 = inlined_call_operand.vmem [shape: f32[1,128], index: 6, kind: input, shape index: {}]
  %s7 = inlined_call_operand.hbm [shape: bf16[128,128], index: 7, kind: input, shape index: {}]
  %s8 = inlined_call_operand.vmem [shape: f32[1,128], index: 8, kind: input, shape index: {}]
  %s9 = inlined_call_operand.hbm [shape: f32[8,11], index: 9, kind: output, shape index: {}]
  %s10 = sld [smem:[#allocation0]]
  $region58: #{tpu_custom_call.1} parent=0
    _
  %s12 = ssub.s32 1, %s10
  %s13 = scalar_select 0, %s12, %s10
  $region1: #{tpu_custom_call.1} parent=0
    #allocation2 [shape = 'u8[8192]{0}', space=vmem, size = 0x2000, scoped, tag = 'input window, operand 2, single buffered']
    #allocation3 [shape = 's32[1]{0}', space=sflag, size = 0x4, scoped, tag = 'scoped memory for tpu_custom_call.1']
    #allocation4 [shape = 's32[1]{0}', space=sflag, size = 0x4, scoped, tag = 'scoped memory for tpu_custom_call.1']
    #allocation5 [shape = 'u8[32768]{0}', space=vmem, size = 0x8000, scoped, tag = 'input window, operand 5, single buffered']
    #allocation6 [shape = 's32[1]{0}', space=sflag, size = 0x4, scoped, tag = 'scoped memory for tpu_custom_call.1']
    #allocation7 [shape = 'u8[32768]{0}', space=vmem, size = 0x8000, scoped, tag = 'input window, operand 7, single buffered']
    #allocation8 [shape = 'u8[4096]{0}', space=vmem, size = 0x1000, scoped, tag = 'output window, operand 0, single buffered']
    %14 = vsyncpa [#allocation3], 0
    %15 = vsyncpa [#allocation6], 0
    %16 = vsyncpa [#allocation4], 0
    // Predicated region
    $region2: #{tpu_custom_call.1} parent=1 // pred_check
      _
    $region3: #{tpu_custom_call.1} parent=1 // pred_check_branch
      %18 = sbr.rel (0) target = $region5
    $region4: #{tpu_custom_call.1} parent=1 // pred_region
      _
    $region5: #{tpu_custom_call.1} parent=1 // pred_fallthru
      _
    // Predicated region
    $region6: #{tpu_custom_call.1} parent=1 // pred_check
      _
    $region7: #{tpu_custom_call.1} parent=1 // pred_check_branch
      %20 = sbr.rel (0) target = $region9
    $region8: #{tpu_custom_call.1} parent=1 // pred_region
      _
    $region9: #{tpu_custom_call.1} parent=1 // pred_fallthru
      _
    // Predicated region
    $region10: #{tpu_custom_call.1} parent=1 // pred_check
      _
    $region11: #{tpu_custom_call.1} parent=1 // pred_check_branch
      %22 = sbr.rel (0) target = $region13
    $region12: #{tpu_custom_call.1} parent=1 // pred_region
      %s24 = ssub.s32 256, 256
      %25 = vsyncadd [#allocation3], %s24
      %s26 = sshll.u32 [#allocation2], 4
      %s27 = int_to_ptr.vmem [resolvable:$true] %s26
      %32 = dma.hbm_to_vmem [thread:$0]  %s2, 256, %s27, [#allocation3], 64, 64, 4
    $region13: #{tpu_custom_call.1} parent=1 // pred_fallthru
      _
    // Predicated region
    $region14: #{tpu_custom_call.1} parent=1 // pred_check
      _
    $region15: #{tpu_custom_call.1} parent=1 // pred_check_branch
      %34 = sbr.rel (0) target = $region17
    $region16: #{tpu_custom_call.1} parent=1 // pred_region
      _
    $region17: #{tpu_custom_call.1} parent=1 // pred_fallthru
      _
    // Predicated region
    $region18: #{tpu_custom_call.1} parent=1 // pred_check
      _
    $region19: #{tpu_custom_call.1} parent=1 // pred_check_branch
      %36 = sbr.rel (0) target = $region21
    $region20: #{tpu_custom_call.1} parent=1 // pred_region
      _
    $region21: #{tpu_custom_call.1} parent=1 // pred_fallthru
      _
    // Predicated region
    $region22: #{tpu_custom_call.1} parent=1 // pred_check
      _
    $region23: #{tpu_custom_call.1} parent=1 // pred_check_branch
      %38 = sbr.rel (0) target = $region25
    $region24: #{tpu_custom_call.1} parent=1 // pred_region
      %s40 = ssub.s32 1024, 1024
      %41 = vsyncadd [#allocation6], %s40
      %s42 = sshll.u32 [#allocation5], 4
      %s43 = int_to_ptr.vmem [resolvable:$true] %s42
      %48 = dma.hbm_to_vmem [thread:$0]  %s5, 1024, %s43, [#allocation6], 64, 64, 4
    $region25: #{tpu_custom_call.1} parent=1 // pred_fallthru
      _
    // Predicated region
    $region26: #{tpu_custom_call.1} parent=1 // pred_check
      _
    $region27: #{tpu_custom_call.1} parent=1 // pred_check_branch
      %50 = sbr.rel (0) target = $region29
    $region28: #{tpu_custom_call.1} parent=1 // pred_region
      _
    $region29: #{tpu_custom_call.1} parent=1 // pred_fallthru
      _
    // Predicated region
    $region30: #{tpu_custom_call.1} parent=1 // pred_check
      _
    $region31: #{tpu_custom_call.1} parent=1 // pred_check_branch
      %52 = sbr.rel (0) target = $region33
    $region32: #{tpu_custom_call.1} parent=1 // pred_region
      %s54 = ssub.s32 1024, 1024
      %55 = vsyncadd [#allocation6], %s54
      %s56 = sshll.u32 [#allocation7], 4
      %s57 = int_to_ptr.vmem [resolvable:$true] %s56
      %62 = dma.hbm_to_vmem [thread:$0]  %s7, 1024, %s57, [#allocation6], 64, 64, 4
    $region33: #{tpu_custom_call.1} parent=1 // pred_fallthru
      _
    // Predicated region
    $region34: #{tpu_custom_call.1} parent=1 // pred_check
      _
    $region35: #{tpu_custom_call.1} parent=1 // pred_check_branch
      %64 = sbr.rel (0) target = $region37
    $region36: #{tpu_custom_call.1} parent=1 // pred_region
      _
    $region37: #{tpu_custom_call.1} parent=1 // pred_fallthru
      _
    // Predicated region
    $region38: #{tpu_custom_call.1} parent=1 // pred_check
      _
    $region39: #{tpu_custom_call.1} parent=1 // pred_check_branch
      %66 = sbr.rel (0) target = $region41
    $region40: #{tpu_custom_call.1} parent=1 // pred_region
      %67 = dma.done [#allocation3], 256
    $region41: #{tpu_custom_call.1} parent=1 // pred_fallthru
      _
    // Predicated region
    $region42: #{tpu_custom_call.1} parent=1 // pred_check
      _
    $region43: #{tpu_custom_call.1} parent=1 // pred_check_branch
      %69 = sbr.rel (0) target = $region45
    $region44: #{tpu_custom_call.1} parent=1 // pred_region
      %70 = dma.done [#allocation6], 1024
    $region45: #{tpu_custom_call.1} parent=1 // pred_fallthru
      _
    // Predicated region
    $region46: #{tpu_custom_call.1} parent=1 // pred_check
      _
    $region47: #{tpu_custom_call.1} parent=1 // pred_check_branch
      %72 = sbr.rel (0) target = $region49
    $region48: #{tpu_custom_call.1} parent=1 // pred_region
      %73 = dma.done [#allocation6], 1024
    $region49: #{tpu_custom_call.1} parent=1 // pred_fallthru
      _
    %v75 = vld [vmem:[%s0] sm:$0xff]
    %v76 = vpack.c.bf16 %v75, %v75
    %v77 = vld [vmem:[#allocation2] sm:$0xf]
    %v78 = vld [vmem:[#allocation2 + $0x4] sm:$0xf]
    %v79 = vld [vmem:[#allocation2 + $0x8] sm:$0xf]
    %v80 = vld [vmem:[#allocation2 + $0xc] sm:$0xf]
    %v81 = vld [vmem:[%s1] sm:$0xff]
    %v82 = vld [vmem:[%s3] sm:$0x1]
    %v83 = vunpack.c.l.bf16 %v82
    %85 = vset.pattern.permute.xlu0 0
    %86 = vperm.xlu0 %85, %v81
    %v87 = vpop.permute.xlu0 %86
    %v89 = vlaneseq
    %v90 = vshrl.u32 %v89, 7
    %v91 = vsub.s32 0, %v90
    %v92 = vrot.slane %v83, %v91
    %v93 = vmul.f32 %v87, %v92
    %v98 = vunpack.c.l.b16 %v77
    %v99 = vunpack.c.l.b16 %v78
    %v100 = vunpack.c.l.b16 %v79
    %v101 = vunpack.c.l.b16 %v80
    %v102 = vpack.c.b16 %v99, %v98
    %v103 = vpack.c.b16 %v101, %v100
    %vm106 = vcmask 261120
    %v108 = vsel %vm106, %v76, 0
    %110 = vmatprep.subr.bf16.mxu0 0
    %111 = vmatpush1.bf16.msra.mxu0 0
    %112 = vmatprep.subr.bf16.mxu0 0
    %113 = vmatpush1.bf16.msra.mxu0 0
    %114 = vmatprep.subr.bf16.mxu0 0
    %115 = vmatpush1.bf16.msra.mxu0 0
    %116 = vmatprep.subr.bf16.mxu0 0
    %117 = vmatpush1.bf16.msra.mxu0 0
    %118 = vmatprep.subr.bf16.mxu0 0
    %119 = vmatpush1.bf16.msra.mxu0 0
    %120 = vmatprep.subr.bf16.mxu0 0
    %121 = vmatpush1.bf16.msra.mxu0 0
    %122 = vmatprep.subr.bf16.mxu0 0
    %123 = vmatpush1.bf16.msra.mxu0 %v103
    %124 = vmatprep.subr.bf16.mxu0 0
    %125 = vmatpush1.bf16.msra.mxu0 %v102
    %126 = vmatprep.subr.bf16.mxu0 0
    %127 = vmatpush2.bf16.msra.mxu0 0
    %128 = vmatprep.subr.bf16.mxu0 0
    %129 = vmatpush2.bf16.msra.mxu0 0
    %130 = vmatprep.subr.bf16.mxu0 0
    %131 = vmatpush2.bf16.msra.mxu0 0
    %132 = vmatprep.subr.bf16.mxu0 0
    %133 = vmatpush2.bf16.msra.mxu0 0
    %134 = vmatprep.subr.bf16.mxu0 0
    %135 = vmatpush2.bf16.msra.mxu0 0
    %136 = vmatprep.subr.bf16.mxu0 0
    %137 = vmatpush2.bf16.msra.mxu0 0
    %138 = vmatprep.subr.bf16.mxu0 0
    %139 = vmatpush2.bf16.msra.mxu0 0
    %140 = vmatprep.subr.bf16.mxu0 0
    %141 = vmatpush2.bf16.msra.mxu0 0
    %142 = vmatprep.mubr.bf16.mxu0 0
    %143 = vmatmul.mubr.bf16.gmra.mxu0 %v108
    %v144 = vpop.f32.mrf.mxu0
    %v145 = vadd.f32 %v93, %v144
    %v146 = vpop.f32.mrf.mxu0
    %v147 = vpop.f32.mrf.mxu0
    %v148 = vpop.f32.mrf.mxu0
    %149 = vdwg.mxu0
    %v150 = vld [vmem:[%s4] sm:$0x1]
    %v152 = vlaneseq
    %v153 = vshrl.u32 %v152, 7
    %v154 = vsub.s32 0, %v153
    %v155 = vrot.slane %v150, %v154
    %v157 = vadd.f32 %v145, %v155
    %v158 = vmax.f32 %v157, 0.0
    %v159 = vpack.c.bf16 %v158, %v158
    %v160 = vld [vmem:[#allocation5] sm:$0xf]
    %v161 = vld [vmem:[#allocation5 + $0x4] sm:$0xf]
    %v162 = vld [vmem:[#allocation5 + $0x8] sm:$0xf]
    %v163 = vld [vmem:[#allocation5 + $0xc] sm:$0xf]
    %v164 = vld [vmem:[#allocation5 + $0x10] sm:$0xf]
    %v165 = vld [vmem:[#allocation5 + $0x14] sm:$0xf]
    %v166 = vld [vmem:[#allocation5 + $0x18] sm:$0xf]
    %v167 = vld [vmem:[#allocation5 + $0x1c] sm:$0xf]
    %v168 = vld [vmem:[#allocation5 + $0x20] sm:$0xf]
    %v169 = vld [vmem:[#allocation5 + $0x24] sm:$0xf]
    %v170 = vld [vmem:[#allocation5 + $0x28] sm:$0xf]
    %v171 = vld [vmem:[#allocation5 + $0x2c] sm:$0xf]
    %v172 = vld [vmem:[#allocation5 + $0x30] sm:$0xf]
    %v173 = vld [vmem:[#allocation5 + $0x34] sm:$0xf]
    %v174 = vld [vmem:[#allocation5 + $0x38] sm:$0xf]
    %v175 = vld [vmem:[#allocation5 + $0x3c] sm:$0xf]
    %v176 = vld [vmem:[%s6] sm:$0x1]
    %v178 = vlaneseq
    %v179 = vshrl.u32 %v178, 7
    %v180 = vsub.s32 0, %v179
    %v181 = vrot.slane %v176, %v180
    %v199 = vunpack.c.l.b16 %v160
    %v200 = vunpack.c.l.b16 %v161
    %v201 = vunpack.c.l.b16 %v162
    %v202 = vunpack.c.l.b16 %v163
    %v203 = vunpack.c.l.b16 %v164
    %v204 = vunpack.c.l.b16 %v165
    %v205 = vunpack.c.l.b16 %v166
    %v206 = vunpack.c.l.b16 %v167
    %v207 = vunpack.c.l.b16 %v168
    %v208 = vunpack.c.l.b16 %v169
    %v209 = vunpack.c.l.b16 %v170
    %v210 = vunpack.c.l.b16 %v171
    %v211 = vunpack.c.l.b16 %v172
    %v212 = vunpack.c.l.b16 %v173
    %v213 = vunpack.c.l.b16 %v174
    %v214 = vunpack.c.l.b16 %v175
    %v215 = vpack.c.b16 %v200, %v199
    %v216 = vpack.c.b16 %v202, %v201
    %v217 = vpack.c.b16 %v204, %v203
    %v218 = vpack.c.b16 %v206, %v205
    %v219 = vpack.c.b16 %v208, %v207
    %v220 = vpack.c.b16 %v210, %v209
    %v221 = vpack.c.b16 %v212, %v211
    %v222 = vpack.c.b16 %v214, %v213
    %231 = vmatprep.subr.bf16.mxu0 0
    %232 = vmatpush1.bf16.msra.mxu0 %v222
    %233 = vmatprep.subr.bf16.mxu0 0
    %234 = vmatpush1.bf16.msra.mxu0 %v221
    %235 = vmatprep.subr.bf16.mxu0 0
    %236 = vmatpush1.bf16.msra.mxu0 %v220
    %237 = vmatprep.subr.bf16.mxu0 0
    %238 = vmatpush1.bf16.msra.mxu0 %v219
    %239 = vmatprep.subr.bf16.mxu0 0
    %240 = vmatpush1.bf16.msra.mxu0 %v218
    %241 = vmatprep.subr.bf16.mxu0 0
    %242 = vmatpush1.bf16.msra.mxu0 %v217
    %243 = vmatprep.subr.bf16.mxu0 0
    %244 = vmatpush1.bf16.msra.mxu0 %v216
    %245 = vmatprep.subr.bf16.mxu0 0
    %246 = vmatpush1.bf16.msra.mxu0 %v215
    %247 = vmatprep.subr.bf16.mxu0 0
    %248 = vmatpush2.bf16.msra.mxu0 0
    %249 = vmatprep.subr.bf16.mxu0 0
    %250 = vmatpush2.bf16.msra.mxu0 0
    %251 = vmatprep.subr.bf16.mxu0 0
    %252 = vmatpush2.bf16.msra.mxu0 0
    %253 = vmatprep.subr.bf16.mxu0 0
    %254 = vmatpush2.bf16.msra.mxu0 0
    %255 = vmatprep.subr.bf16.mxu0 0
    %256 = vmatpush2.bf16.msra.mxu0 0
    %257 = vmatprep.subr.bf16.mxu0 0
    %258 = vmatpush2.bf16.msra.mxu0 0
    %259 = vmatprep.subr.bf16.mxu0 0
    %260 = vmatpush2.bf16.msra.mxu0 0
    %261 = vmatprep.subr.bf16.mxu0 0
    %262 = vmatpush2.bf16.msra.mxu0 0
    %263 = vmatprep.mubr.bf16.mxu0 0
    %264 = vmatmul.mubr.bf16.gmra.mxu0 %v159
    %v265 = vpop.f32.mrf.mxu0
    %v266 = vadd.f32 %v181, %v265
    %v267 = vpop.f32.mrf.mxu0
    %v268 = vpop.f32.mrf.mxu0
    %v269 = vpop.f32.mrf.mxu0
    %270 = vdwg.mxu0
    %v271 = vmax.f32 %v266, 0.0
    %v272 = vpack.c.bf16 %v271, %v271
    %v273 = vld [vmem:[#allocation7] sm:$0xf]
    %v274 = vld [vmem:[#allocation7 + $0x4] sm:$0xf]
    %v275 = vld [vmem:[#allocation7 + $0x8] sm:$0xf]
    %v276 = vld [vmem:[#allocation7 + $0xc] sm:$0xf]
    %v277 = vld [vmem:[#allocation7 + $0x10] sm:$0xf]
    %v278 = vld [vmem:[#allocation7 + $0x14] sm:$0xf]
    %v279 = vld [vmem:[#allocation7 + $0x18] sm:$0xf]
    %v280 = vld [vmem:[#allocation7 + $0x1c] sm:$0xf]
    %v281 = vld [vmem:[#allocation7 + $0x20] sm:$0xf]
    %v282 = vld [vmem:[#allocation7 + $0x24] sm:$0xf]
    %v283 = vld [vmem:[#allocation7 + $0x28] sm:$0xf]
    %v284 = vld [vmem:[#allocation7 + $0x2c] sm:$0xf]
    %v285 = vld [vmem:[#allocation7 + $0x30] sm:$0xf]
    %v286 = vld [vmem:[#allocation7 + $0x34] sm:$0xf]
    %v287 = vld [vmem:[#allocation7 + $0x38] sm:$0xf]
    %v288 = vld [vmem:[#allocation7 + $0x3c] sm:$0xf]
    %v289 = vld [vmem:[%s8] sm:$0x1]
    %v291 = vlaneseq
    %v292 = vshrl.u32 %v291, 7
    %v293 = vsub.s32 0, %v292
    %v294 = vrot.slane %v289, %v293
    %v312 = vunpack.c.l.b16 %v273
    %v313 = vunpack.c.l.b16 %v274
    %v314 = vunpack.c.l.b16 %v275
    %v315 = vunpack.c.l.b16 %v276
    %v316 = vunpack.c.l.b16 %v277
    %v317 = vunpack.c.l.b16 %v278
    %v318 = vunpack.c.l.b16 %v279
    %v319 = vunpack.c.l.b16 %v280
    %v320 = vunpack.c.l.b16 %v281
    %v321 = vunpack.c.l.b16 %v282
    %v322 = vunpack.c.l.b16 %v283
    %v323 = vunpack.c.l.b16 %v284
    %v324 = vunpack.c.l.b16 %v285
    %v325 = vunpack.c.l.b16 %v286
    %v326 = vunpack.c.l.b16 %v287
    %v327 = vunpack.c.l.b16 %v288
    %v328 = vpack.c.b16 %v313, %v312
    %v329 = vpack.c.b16 %v315, %v314
    %v330 = vpack.c.b16 %v317, %v316
    %v331 = vpack.c.b16 %v319, %v318
    %v332 = vpack.c.b16 %v321, %v320
    %v333 = vpack.c.b16 %v323, %v322
    %v334 = vpack.c.b16 %v325, %v324
    %v335 = vpack.c.b16 %v327, %v326
    %344 = vmatprep.subr.bf16.mxu0 0
    %345 = vmatpush1.bf16.msra.mxu0 %v335
    %346 = vmatprep.subr.bf16.mxu0 0
    %347 = vmatpush1.bf16.msra.mxu0 %v334
    %348 = vmatprep.subr.bf16.mxu0 0
    %349 = vmatpush1.bf16.msra.mxu0 %v333
    %350 = vmatprep.subr.bf16.mxu0 0
    %351 = vmatpush1.bf16.msra.mxu0 %v332
    %352 = vmatprep.subr.bf16.mxu0 0
    %353 = vmatpush1.bf16.msra.mxu0 %v331
    %354 = vmatprep.subr.bf16.mxu0 0
    %355 = vmatpush1.bf16.msra.mxu0 %v330
    %356 = vmatprep.subr.bf16.mxu0 0
    %357 = vmatpush1.bf16.msra.mxu0 %v329
    %358 = vmatprep.subr.bf16.mxu0 0
    %359 = vmatpush1.bf16.msra.mxu0 %v328
    %360 = vmatprep.subr.bf16.mxu0 0
    %361 = vmatpush2.bf16.msra.mxu0 0
    %362 = vmatprep.subr.bf16.mxu0 0
    %363 = vmatpush2.bf16.msra.mxu0 0
    %364 = vmatprep.subr.bf16.mxu0 0
    %365 = vmatpush2.bf16.msra.mxu0 0
    %366 = vmatprep.subr.bf16.mxu0 0
    %367 = vmatpush2.bf16.msra.mxu0 0
    %368 = vmatprep.subr.bf16.mxu0 0
    %369 = vmatpush2.bf16.msra.mxu0 0
    %370 = vmatprep.subr.bf16.mxu0 0
    %371 = vmatpush2.bf16.msra.mxu0 0
    %372 = vmatprep.subr.bf16.mxu0 0
    %373 = vmatpush2.bf16.msra.mxu0 0
    %374 = vmatprep.subr.bf16.mxu0 0
    %375 = vmatpush2.bf16.msra.mxu0 0
    %376 = vmatprep.mubr.bf16.mxu0 0
    %377 = vmatmul.mubr.bf16.gmra.mxu0 %v272
    %v378 = vpop.f32.mrf.mxu0
    %v379 = vadd.f32 %v294, %v378
    %v380 = vpop.f32.mrf.mxu0
    %v381 = vpop.f32.mrf.mxu0
    %v382 = vpop.f32.mrf.mxu0
    %383 = vdwg.mxu0
    %vm384 = vcmask 89088
    %385 = vst.msk [vmem:[#allocation8] sm:$0xff] %vm384, %v379
    // Predicated region
    $region50: #{tpu_custom_call.1} parent=1 // pred_check
      _
    $region51: #{tpu_custom_call.1} parent=1 // pred_check_branch
      %387 = sbr.rel (0) target = $region53
    $region52: #{tpu_custom_call.1} parent=1 // pred_region
      %s389 = ssub.s32 128, 128
      %390 = vsyncadd [#allocation4], %s389
      %s392 = sshll.u32 [#allocation8], 4
      %s393 = int_to_ptr.vmem [resolvable:$true] %s392
      %395 = dma.vmem_to_hbm [thread:$0]  %s393, 128, %s9, [#allocation4]
    $region53: #{tpu_custom_call.1} parent=1 // pred_fallthru
      _
    // Predicated region
    $region54: #{tpu_custom_call.1} parent=1 // pred_check
      _
    $region55: #{tpu_custom_call.1} parent=1 // pred_check_branch
      %397 = sbr.rel (0) target = $region57
    $region56: #{tpu_custom_call.1} parent=1 // pred_region
      %398 = dma.done [#allocation4], 128
    $region57: #{tpu_custom_call.1} parent=1 // pred_fallthru
      _
    %399 = vsyncpa [#allocation3], 1
    %400 = vsyncpa [#allocation6], 1
    %401 = vsyncpa [#allocation4], 1

</llo_original>
